<compile_context>
chip_gen: v7x
topology: tpu7x:2x2x1
jax: 0.10.0
libtpu: 0.0.40
codegen_flags: <defaults>
</compile_context>

<pallas_src>
import functools
import math

import jax
import jax.numpy as jnp
from jax.experimental import pallas as pl
from jax.experimental.pallas import tpu as pltpu


def _round_up(x: int, m: int) -> int:
    return ((x + m - 1) // m) * m


def _default_num_shards() -> int:
    # v7x-family chips have 2 TensorCores per chip; v5e/v6e have 1 (an extra
    # shard there is just a useless outer serial loop).
    try:
        kind = jax.devices()[0].device_kind.lower()
    except Exception:
        return 1
    return 2 if ("v7" in kind or "tpu7" in kind) else 1


def _choose_tile_n(n: int, c: int, itemsize: int) -> int:
    # HBM-stream target: ~6 MiB of pred per grid step (amortizes the ~0.35 us
    # fixed per-step overhead; measured roofline saturates with 1-4+ MiB tiles).
    hbm_budget = 6 * 1024 * 1024
    t = hbm_budget // max(1, c * itemsize)

    # Real VMEM cost per row:
    #   2x double-buffered pred block (lanes padded to 128)
    # + 2x double-buffered (tile_n, 1) int32 label block (512 B/row lane-padded)
    # + ~6 lane-sparse (tile_n, 1) f32/int32 in-step temporaries.
    lane_c = _round_up(c, 128)
    row_vmem = 2 * (lane_c * itemsize + 512) + 6 * 512
    vmem_budget = 40 * 1024 * 1024          # headroom under the 48 MiB limit below
    t = min(t, vmem_budget // row_vmem)

    # Align to the packed-dtype sublane count (8 f32, 16 bf16, 32 int8/fp8).
    sub = 16 if itemsize == 2 else (32 if itemsize == 1 else 8)
    t = max(sub, (t // sub) * sub)
    if t >= n:                              # single tile covers everything
        t = _round_up(n, 8)
    return t


def _sce_kernel(iota_ref, pred_ref, gt_ref, out_ref, acc_ref, *,
                n_actual: int, tile_n: int, tiles_per_shard: int,
                c_logp: float, c_picked: float, c_pred: float,
                assume_normalized: bool):
    shard = pl.program_id(0)
    step = pl.program_id(1)

    @pl.when(step == 0)
    def _init():
        acc_ref[...] = jnp.zeros_like(acc_ref)

    pred = pred_ref[...].astype(jnp.float32)        # (tile_n, C), upcast in-kernel
    labels = gt_ref[...]                            # (tile_n, 1) int32
    class_ids = iota_ref[...]                       # (1, C) int32, resident in VMEM

    # Valid-row mask: rows beyond the true N (ragged last block, or clamped
    # duplicate blocks from the shard split) must not contribute.
    row_base = (shard * tiles_per_shard + step) * tile_n
    row_ids = row_base + jax.lax.broadcasted_iota(jnp.int32, (tile_n, 1), 0)
    row_valid = row_ids < n_actual                  # (tile_n, 1) bool

    # One-hot select of the target-class probability (VPU compare + select);
    # the class-id iota is hoisted out of the kernel (broadcast from (1, C)).
    target_mask = class_ids == labels               # (tile_n, C) bool
    picked = jnp.sum(jnp.where(target_mask, pred, 0.0), axis=-1, keepdims=True)

    # Only tile_n transcendentals per tile (EUP stays off the critical path).
    logp = jnp.log(jnp.where(row_valid, picked, 1.0))

    per_row = jnp.float32(c_logp) * logp + jnp.float32(c_picked) * picked
    if not assume_normalized:
        psum = jnp.sum(pred, axis=-1, keepdims=True)
        per_row = per_row + jnp.float32(c_pred) * psum
    per_row = jnp.where(row_valid, per_row, 0.0)

    # Single lane-dense accumulator (one vreg) instead of (tile_n, 1) buffers.
    acc_ref[...] += jnp.sum(per_row)

    @pl.when(step == pl.num_programs(1) - 1)
    def _finalize():
        out_ref[...] = acc_ref[...]


def sce_loss(y_pred: jax.Array, y_gt: jax.Array, alpha: float, beta: float,
             *, num_shards: int | None = None, tile_n: int | None = None,
             assume_normalized: bool = False) -> jax.Array:
    """y_pred: (N, C) probabilities (f32 or bf16); y_gt: (N,) integer labels.

    If `assume_normalized=True`, rows of y_pred are assumed to sum to exactly 1
    (softmax outputs) and the sum(pred) reduction is skipped in-kernel.
    """
    n, c = y_pred.shape
    if num_shards is None:
        num_shards = _default_num_shards()
    gt2d = y_gt.astype(jnp.int32).reshape(n, 1)
    class_iota = jnp.arange(c, dtype=jnp.int32).reshape(1, c)

    itemsize = jnp.dtype(y_pred.dtype).itemsize
    if tile_n is None:
        tile_n = _choose_tile_n(n, c, itemsize)
    assert tile_n % 8 == 0, "tile_n must be a sublane multiple"

    total_tiles = pl.cdiv(n, tile_n)
    tiles_per_shard = pl.cdiv(total_tiles, num_shards)
    last_block = total_tiles - 1
    need_clamp = num_shards * tiles_per_shard != total_tiles

    def row_block(s, i):
        b = s * tiles_per_shard + i
        if need_clamp:
            # Keep every DMA in-bounds; the duplicated block is fully masked
            # out in-kernel via row_valid (row_base uses the unclamped index).
            b = jnp.minimum(b, last_block)
        return (b, 0)

    # Fold eps / alpha / beta / 1/(N*C) into three per-row coefficients:
    #   loss = c_logp * sum(log picked) + c_picked * sum(picked) + c_pred * sum(pred)
    eps = 1e-7
    log_eps = math.log(eps)
    log1p_eps = math.log1p(eps)
    inv_nc = 1.0 / (float(n) * float(c))
    a, b = float(alpha), float(beta)
    c_logp = -a * inv_nc
    c_pred = -b * b * log_eps * inv_nc
    c_picked = b * b * (log_eps - log1p_eps) * inv_nc

    kernel = functools.partial(
        _sce_kernel,
        n_actual=n, tile_n=tile_n, tiles_per_shard=tiles_per_shard,
        c_logp=c_logp, c_picked=c_picked, c_pred=c_pred,
        assume_normalized=assume_normalized)

    out = pl.pallas_call(
        kernel,
        out_shape=jax.ShapeDtypeStruct((num_shards * 8, 128), jnp.float32),
        grid_spec=pltpu.PrefetchScalarGridSpec(
            num_scalar_prefetch=0,
            grid=(num_shards, tiles_per_shard),
            in_specs=[
                pl.BlockSpec((1, c), lambda s, i: (0, 0)),       # hoisted iota
                pl.BlockSpec((tile_n, c), row_block),             # pred stream
                pl.BlockSpec((tile_n, 1), row_block),             # labels
            ],
            out_specs=pl.BlockSpec((8, 128), lambda s, i: (s, 0)),
            scratch_shapes=[pltpu.VMEM((8, 128), jnp.float32)],
        ),
        compiler_params=pltpu.CompilerParams(
            dimension_semantics=("parallel", "arbitrary"),
            vmem_limit_bytes=48 * 1024 * 1024),
    )(class_iota, y_pred, gt2d)

    # Each shard's partial loss fills its (8, 128) output block; any element works.
    loss = jnp.sum(out[0::8, 0])
    if assume_normalized:
        # sum(pred) over the N valid rows == N exactly; add its term once.
        loss = loss + jnp.float32(c_pred * n)
    return loss


def _sce_reference(y_pred, y_gt, alpha, beta):
    n, c = y_pred.shape
    onehot = jax.nn.one_hot(y_gt, c, dtype=jnp.float32)
    pred = y_pred.astype(jnp.float32)
    l_ce = -jnp.sum(onehot * jnp.log(pred), axis=0) / n
    l_ce = alpha * (jnp.sum(l_ce) / c)
    l_rce = beta * -jnp.sum(pred * jnp.log(onehot + 1e-7), axis=0) / n
    l_rce = beta * (jnp.sum(l_rce) / c)
    return l_ce + l_rce


if __name__ == "__main__":
    key = jax.random.PRNGKey(0)
    alpha, beta = 0.1, 1.0   # deterministic "constructor" params
    k1, k2, k3, k4 = jax.random.split(key, 4)

    # Small case matching the module's forward: (N, C) probabilities + labels.
    N, C = 8, 32
    logits = jax.random.normal(k1, (N, C), dtype=jnp.float32)
    y_pred = jax.nn.softmax(logits, axis=-1)                  # valid probabilities
    y_gt = jax.random.randint(k2, (N,), 0, C, dtype=jnp.int32)

    out = jax.block_until_ready(sce_loss(y_pred, y_gt, alpha, beta))
    ref = _sce_reference(y_pred, y_gt, alpha, beta)
    assert jnp.allclose(out, ref, atol=1e-5, rtol=1e-5), (out, ref)

    # Ragged multi-tile / multi-shard path (exercises no-pad OOB masking and the
    # clamped shard grid) with a forced small tile.
    N2, C2 = 300, 32
    y_pred2 = jax.nn.softmax(jax.random.normal(k3, (N2, C2), jnp.float32), axis=-1)
    y_gt2 = jax.random.randint(k4, (N2,), 0, C2, dtype=jnp.int32)
    out2 = jax.block_until_ready(
        sce_loss(y_pred2, y_gt2, alpha, beta, num_shards=2, tile_n=64))
    ref2 = _sce_reference(y_pred2, y_gt2, alpha, beta)
    assert jnp.allclose(out2, ref2, atol=1e-5, rtol=1e-4), (out2, ref2)

    print("KERNEL_OK")
</pallas_src>

<mosaic_0001>
module attributes {stable_mosaic.version = 11 : i64} {
  func.func @_sce_kernel(%arg0: i32, %arg1: i32, %arg2: memref<1x32xi32, #tpu.memory_space<vmem>>, %arg3: memref<8x32xf32, #tpu.memory_space<vmem>>, %arg4: memref<8x1xi32, #tpu.memory_space<vmem>>, %arg5: memref<8x128xf32, #tpu.memory_space<vmem>>, %arg6: memref<8x128xf32, #tpu.memory_space<vmem>>) attributes {dimension_semantics = [#tpu.dimension_semantics<parallel>, #tpu.dimension_semantics<arbitrary>], iteration_bounds = array<i64: 1, 1>, scalar_prefetch = 0 : i64, scratch_operands = 1 : i64, tpu.core_type = #tpu.core_type<tc>, window_params = [{pipeline_mode = #tpu.pipeline_mode<synchronous>, transform_indices = @transform_0, window_bounds = array<i64: 1, 32>}, {transform_indices = @transform_1, window_bounds = array<i64: 8, 32>}, {transform_indices = @transform_2, window_bounds = array<i64: 8, 1>}, {transform_indices = @transform_3, window_bounds = array<i64: 8, 128>}]} {
    %c0_i32 = arith.constant 0 : i32
    %0 = arith.cmpi eq, %arg1, %c0_i32 : i32
    %1 = arith.extui %0 : i1 to i32
    %c0_i32_0 = arith.constant 0 : i32
    %2 = arith.cmpi ne, %1, %c0_i32_0 : i32
    scf.if %2 {
      %cst_21 = arith.constant 0.000000e+00 : f32
      %47 = vector.broadcast %cst_21 : f32 to vector<8x128xf32>
      %c0_22 = arith.constant 0 : index
      %c0_23 = arith.constant 0 : index
      %48 = vector.load %arg6[%c0_22, %c0_23] : memref<8x128xf32, #tpu.memory_space<vmem>>, vector<8x128xf32>
      tpu.vector_store %arg6[%c0_22, %c0_23], %47 {strides = array<i32>} : memref<8x128xf32, #tpu.memory_space<vmem>>, vector<8x128xf32>,
    } else {
    }
    %c0 = arith.constant 0 : index
    %c0_1 = arith.constant 0 : index
    %3 = vector.load %arg3[%c0, %c0_1] : memref<8x32xf32, #tpu.memory_space<vmem>>, vector<8x32xf32>
    %c0_2 = arith.constant 0 : index
    %c0_3 = arith.constant 0 : index
    %4 = vector.load %arg4[%c0_2, %c0_3] : memref<8x1xi32, #tpu.memory_space<vmem>>, vector<8x1xi32>
    %c0_4 = arith.constant 0 : index
    %c0_5 = arith.constant 0 : index
    %5 = vector.load %arg2[%c0_4, %c0_5] : memref<1x32xi32, #tpu.memory_space<vmem>>, vector<1x32xi32>
    %c1_i32 = arith.constant 1 : i32
    %6 = arith.muli %arg0, %c1_i32 : i32
    %7 = arith.addi %6, %arg1 : i32
    %c8_i32 = arith.constant 8 : i32
    %8 = arith.muli %7, %c8_i32 : i32
    %9 = tpu.iota {dimensions = array<i32: 0>} : vector<8x1xi32>
    %10 = vector.broadcast %8 : i32 to vector<8x1xi32>
    %11 = arith.addi %10, %9 : vector<8x1xi32>
    %c8_i32_6 = arith.constant 8 : i32
    %12 = vector.broadcast %c8_i32_6 : i32 to vector<8x1xi32>
    %13 = arith.cmpi slt, %11, %12 : vector<8x1xi32>
    %14 = vector.broadcast %5 : vector<1x32xi32> to vector<8x32xi32>
    %15 = vector.broadcast %4 : vector<8x1xi32> to vector<8x32xi32>
    %16 = arith.cmpi eq, %14, %15 : vector<8x32xi32>
    %cst = arith.constant 0.000000e+00 : f32
    %17 = vector.broadcast %cst : f32 to vector<8x32xf32>
    %18 = arith.select %16, %3, %17 : vector<8x32xi1>, vector<8x32xf32>
    %cst_7 = arith.constant dense<0.000000e+00> : vector<8xf32>
    %19 = vector.multi_reduction <add>, %18, %cst_7 [1] : vector<8x32xf32> to vector<8xf32>
    %20 = vector.shape_cast %19 : vector<8xf32> to vector<8x1xf32>
    %cst_8 = arith.constant 1.000000e+00 : f32
    %21 = vector.broadcast %cst_8 : f32 to vector<8x1xf32>
    %22 = arith.select %13, %20, %21 : vector<8x1xi1>, vector<8x1xf32>
    %23 = math.log %22 : vector<8x1xf32>
    %cst_9 = arith.constant -3.906250e-04 : f32
    %24 = vector.broadcast %cst_9 : f32 to vector<8x1xf32>
    %25 = arith.mulf %24, %23 : vector<8x1xf32>
    %cst_10 = arith.constant -0.0629613101 : f32
    %26 = vector.broadcast %cst_10 : f32 to vector<8x1xf32>
    %27 = arith.mulf %26, %20 : vector<8x1xf32>
    %28 = arith.addf %25, %27 : vector<8x1xf32>
    %cst_11 = arith.constant dense<0.000000e+00> : vector<8xf32>
    %29 = vector.multi_reduction <add>, %3, %cst_11 [1] : vector<8x32xf32> to vector<8xf32>
    %30 = vector.shape_cast %29 : vector<8xf32> to vector<8x1xf32>
    %cst_12 = arith.constant 0.0629613101 : f32
    %31 = vector.broadcast %cst_12 : f32 to vector<8x1xf32>
    %32 = arith.mulf %31, %30 : vector<8x1xf32>
    %33 = arith.addf %28, %32 : vector<8x1xf32>
    %cst_13 = arith.constant 0.000000e+00 : f32
    %34 = vector.broadcast %cst_13 : f32 to vector<8x1xf32>
    %35 = arith.select %13, %33, %34 : vector<8x1xi1>, vector<8x1xf32>
    %c0_14 = arith.constant 0 : index
    %c0_15 = arith.constant 0 : index
    %36 = vector.load %arg6[%c0_14, %c0_15] : memref<8x128xf32, #tpu.memory_space<vmem>>, vector<8x128xf32>
    %37 = vector.shape_cast %35 : vector<8x1xf32> to vector<1x8x1xf32>
    %cst_16 = arith.constant dense<0.000000e+00> : vector<1xf32>
    %38 = vector.multi_reduction <add>, %37, %cst_16 [1, 2] : vector<1x8x1xf32> to vector<1xf32>
    %39 = vector.shape_cast %38 : vector<1xf32> to vector<1x1x1xf32>
    %40 = vector.extract %39[0, 0, 0] : f32 from vector<1x1x1xf32>
    %41 = vector.broadcast %40 : f32 to vector<8x128xf32>
    %42 = arith.addf %36, %41 : vector<8x128xf32>
    %c0_17 = arith.constant 0 : index
    %c0_18 = arith.constant 0 : index
    %43 = vector.load %arg6[%c0_17, %c0_18] : memref<8x128xf32, #tpu.memory_space<vmem>>, vector<8x128xf32>
    tpu.vector_store %arg6[%c0_17, %c0_18], %42 {strides = array<i32>} : memref<8x128xf32, #tpu.memory_space<vmem>>, vector<8x128xf32>,
    %c0_i32_19 = arith.constant 0 : i32
    %44 = arith.cmpi eq, %arg1, %c0_i32_19 : i32
    %45 = arith.extui %44 : i1 to i32
    %c0_i32_20 = arith.constant 0 : i32
    %46 = arith.cmpi ne, %45, %c0_i32_20 : i32
    scf.if %46 {
      %c0_21 = arith.constant 0 : index
      %c0_22 = arith.constant 0 : index
      %47 = vector.load %arg6[%c0_21, %c0_22] : memref<8x128xf32, #tpu.memory_space<vmem>>, vector<8x128xf32>
      %c0_23 = arith.constant 0 : index
      %c0_24 = arith.constant 0 : index
      %48 = vector.load %arg5[%c0_23, %c0_24] : memref<8x128xf32, #tpu.memory_space<vmem>>, vector<8x128xf32>
      tpu.vector_store %arg5[%c0_23, %c0_24], %47 {strides = array<i32>} : memref<8x128xf32, #tpu.memory_space<vmem>>, vector<8x128xf32>,
    } else {
    }
    return
  }
  func.func @transform_0(%arg0: i32, %arg1: i32) -> (i32, i32) {
    %c0_i32 = arith.constant 0 : i32
    %c0_i32_0 = arith.constant 0 : i32
    %c0_i32_1 = arith.constant 0 : i32
    return %c0_i32, %c0_i32_0 : i32, i32
  }
  func.func @transform_1(%arg0: i32, %arg1: i32) -> (i32, i32) {
    %c1_i32 = arith.constant 1 : i32
    %0 = arith.muli %arg0, %c1_i32 : i32
    %1 = arith.addi %0, %arg1 : i32
    %c0_i32 = arith.constant 0 : i32
    %c0_i32_0 = arith.constant 0 : i32
    return %1, %c0_i32 : i32, i32
  }
  func.func @transform_2(%arg0: i32, %arg1: i32) -> (i32, i32) {
    %c1_i32 = arith.constant 1 : i32
    %0 = arith.muli %arg0, %c1_i32 : i32
    %1 = arith.addi %0, %arg1 : i32
    %c0_i32 = arith.constant 0 : i32
    %c0_i32_0 = arith.constant 0 : i32
    return %1, %c0_i32 : i32, i32
  }
  func.func @transform_3(%arg0: i32, %arg1: i32) -> (i32, i32) {
    %c0_i32 = arith.constant 0 : i32
    %c0_i32_0 = arith.constant 0 : i32
    return %arg0, %c0_i32 : i32, i32
  }
}

</mosaic_0001>

<llo_original>
// kernel: tpu_custom_call.1
$region0: #{tpu_custom_call.1}
  #allocation0 [shape = 'u32[]', space=smem, size = 0x4, offset = 0x4, fixed_abs, tag = 'smem constant byte address 0x4 - core index']
  #allocation1 [shape = 'u32[144,128]{1,0:T(1,128)}', space=vmem, size = 0x12000, scoped, tag = 'internal scratch']
  #allocation2 [shape = 'f32[8,128]{1,0:T(8,128)}', space=vmem, size = 0x1000, scoped, tag = 'scratch operand']
  %s0 = inlined_call_operand.vmem [shape: s32[1,32], index: 0, kind: input, shape index: {}]
  %s1 = inlined_call_operand.vmem [shape: f32[8,32], index: 1, kind: input, shape index: {}]
  %s2 = inlined_call_operand.vmem [shape: s32[8,1], index: 2, kind: input, shape index: {}]
  %s3 = inlined_call_operand.hbm [shape: f32[8,128], index: 3, kind: output, shape index: {}]
  %s4 = sld [smem:[#allocation0]]
  $region30: #{tpu_custom_call.1} parent=0
    _
  %s6 = ssub.s32 1, %s4
  %s7 = scalar_select 0, %s6, %s4
  $region1: #{tpu_custom_call.1} parent=0
    #allocation3 [shape = 'u8[4096]{0}', space=vmem, size = 0x1000, scoped, tag = 'output window, operand 0, single buffered']
    #allocation4 [shape = 's32[1]{0}', space=sflag, size = 0x4, scoped, tag = 'scoped memory for tpu_custom_call.1']
    %8 = vsyncpa [#allocation4], 0
    // Predicated region
    $region2: #{tpu_custom_call.1} parent=1 // pred_check
      _
    $region3: #{tpu_custom_call.1} parent=1 // pred_check_branch
      %10 = sbr.rel (0) target = $region5
    $region4: #{tpu_custom_call.1} parent=1 // pred_region
      _
    $region5: #{tpu_custom_call.1} parent=1 // pred_fallthru
      _
    // Predicated region
    $region6: #{tpu_custom_call.1} parent=1 // pred_check
      _
    $region7: #{tpu_custom_call.1} parent=1 // pred_check_branch
      %12 = sbr.rel (0) target = $region9
    $region8: #{tpu_custom_call.1} parent=1 // pred_region
      %s13 = sadd.s32 0, 0
      %p14 = scmp.lt.s32.totalorder %s13, 0
      %s15 = scalar_select %p14, %s13, 0
      %s16 = smul.addr %s15, 8
      %s17 = scalar_lea.vmem %s1, %s16
      %s18 = sadd.s32 0, 0
    $region9: #{tpu_custom_call.1} parent=1 // pred_fallthru
      _
    // Predicated region
    $region10: #{tpu_custom_call.1} parent=1 // pred_check
      _
    $region11: #{tpu_custom_call.1} parent=1 // pred_check_branch
      %20 = sbr.rel (0) target = $region13
    $region12: #{tpu_custom_call.1} parent=1 // pred_region
      %s21 = sadd.s32 0, 0
      %p22 = scmp.lt.s32.totalorder %s21, 0
      %s23 = scalar_select %p22, %s21, 0
      %s24 = smul.addr %s23, 8
      %s25 = scalar_lea.vmem %s2, %s24
      %s26 = sadd.s32 0, 0
    $region13: #{tpu_custom_call.1} parent=1 // pred_fallthru
      _
    %s27 = sadd.s32 0, 0
    %p28 = scmp.lt.s32.totalorder %s27, 0
    %s29 = scalar_select %p28, %s27, 0
    %s30 = smul.addr %s29, 8
    %s31 = scalar_lea.vmem %s1, %s30
    %s32 = sadd.s32 0, 0
    %p33 = scmp.lt.s32.totalorder %s32, 0
    %s34 = scalar_select %p33, %s32, 0
    %s35 = smul.addr %s34, 8
    %s36 = scalar_lea.vmem %s2, %s35
    %s37 = sadd.s32 0, 0
    %p38 = scmp.lt.s32.totalorder %s37, 0
    %s39 = scalar_select %p38, %s37, 0
    %s40 = smul.addr %s39, 8
    %s41 = scalar_lea.vmem %s1, %s40
    %s42 = sadd.s32 0, 0
    %s43 = sadd.s32 0, 0
    %p44 = scmp.lt.s32.totalorder %s43, 0
    %s45 = scalar_select %p44, %s43, 0
    %s46 = smul.addr %s45, 8
    %s47 = scalar_lea.vmem %s2, %s46
    %s48 = sadd.s32 0, 0
    %p49 = scmp.eq.s32.totalorder 0, 0
    // Predicated region
    $region14: #{tpu_custom_call.1} parent=1 // pred_check
      %p50 = pneg %p49
    $region15: #{tpu_custom_call.1} parent=1 // pred_check_branch
      %52 = sbr.rel (%p50) target = $region17
    $region16: #{tpu_custom_call.1} parent=1 // pred_region
      %53 = vst [vmem:[#allocation2] sm:$0xff] 0.0
    $region17: #{tpu_custom_call.1} parent=1 // pred_fallthru
      _
    %v54 = vld [vmem:[%s41] sm:$0xff]
    %v55 = vld [vmem:[%s47] sm:$0xff]
    %v56 = vld [vmem:[%s0] sm:$0x1]
    %s57 = sadd.s32 0, 0
    %s58 = smul.u32 %s57, 8
    %v59 = vlaneseq
    %v60 = vshrl.u32 %v59, 7
    %v61 = vstv %s58
    %v62 = vadd.s32 %v61, %v60
    %vm63 = vcmp.lt.s32.totalorder %v62, 8
    %v64 = vlaneseq
    %v65 = vshrl.u32 %v64, 7
    %v66 = vsub.s32 0, %v65
    %v67 = vrot.slane %v56, %v66
    %68 = vset.pattern.permute.xlu0 0
    %69 = vperm.xlu0 %68, %v55
    %v70 = vpop.permute.xlu0 %69
    %vm71 = vcmp.eq.s32.totalorder %v67, %v70
    %v72 = vsel %vm71, %v54, 0.0
    %vm73 = vcmask 261120
    %v74 = vsel %vm73, %v72, 0.0
    %75 = vadd.xlane.f32.xlu0 %v74
    %v76 = vpop.xlane.xlu0 %75
    %v77 = vsel %vm63, %v76, 1.0
    %v78 = vlog2.pop %v77
    %v79 = vmul.f32 %v78, 0.6931472
    %v80 = vmul.f32 %v79, -0.000390625
    %v81 = vmul.f32 %v76, -0.06296131
    %v82 = vadd.f32 %v80, %v81
    %v83 = vsel %vm73, %v54, 0.0
    %84 = vadd.xlane.f32.xlu0 %v83
    %v85 = vpop.xlane.xlu0 %84
    %v86 = vmul.f32 %v85, 0.06296131
    %v87 = vadd.f32 %v82, %v86
    %v88 = vsel %vm63, %v87, 0.0
    %v89 = vld [vmem:[#allocation2] sm:$0xff]
    %vm90 = vcmask 7168
    %v91 = vsel %vm90, %v88, 0.0
    %92 = vadd.xlane.f32.xlu0 %v91
    %v93 = vpop.xlane.xlu0 %92
    %v94 = vrot.slane %v93, 4
    %v95 = vadd.f32 %v93, %v94
    %v96 = vrot.slane %v95, 2
    %v97 = vadd.f32 %v95, %v96
    %v98 = vrot.slane %v97, 1
    %v99 = vadd.f32 %v97, %v98
    %s100 = vtos %v99
    %v101 = vstv %s100
    %v102 = vadd.f32 %v89, %v101
    %103 = vst [vmem:[#allocation2] sm:$0xff] %v102
    // Predicated region
    $region18: #{tpu_custom_call.1} parent=1 // pred_check
      %p104 = pneg %p49
    $region19: #{tpu_custom_call.1} parent=1 // pred_check_branch
      %106 = sbr.rel (%p104) target = $region21
    $region20: #{tpu_custom_call.1} parent=1 // pred_region
      %v107 = vld [vmem:[#allocation2] sm:$0xff]
      %108 = vst [vmem:[#allocation3] sm:$0xff] %v107
    $region21: #{tpu_custom_call.1} parent=1 // pred_fallthru
      _
    // Predicated region
    $region22: #{tpu_custom_call.1} parent=1 // pred_check
      _
    $region23: #{tpu_custom_call.1} parent=1 // pred_check_branch
      %110 = sbr.rel (0) target = $region25
    $region24: #{tpu_custom_call.1} parent=1 // pred_region
      %s112 = ssub.s32 128, 128
      %113 = vsyncadd [#allocation4], %s112
      %s115 = sshll.u32 [#allocation3], 4
      %s116 = int_to_ptr.vmem [resolvable:$true] %s115
      %118 = dma.vmem_to_hbm [thread:$0]  %s116, 128, %s3, [#allocation4]
    $region25: #{tpu_custom_call.1} parent=1 // pred_fallthru
      _
    // Predicated region
    $region26: #{tpu_custom_call.1} parent=1 // pred_check
      _
    $region27: #{tpu_custom_call.1} parent=1 // pred_check_branch
      %120 = sbr.rel (0) target = $region29
    $region28: #{tpu_custom_call.1} parent=1 // pred_region
      %121 = dma.done [#allocation4], 128
    $region29: #{tpu_custom_call.1} parent=1 // pred_fallthru
      _
    %122 = vsyncpa [#allocation4], 1

</llo_original>
